<compile_context>
chip_gen: v7x
topology: tpu7x:2x2x1
jax: 0.10.0
libtpu: 0.0.40
codegen_flags: <defaults>
</compile_context>

<pallas_src>
import jax
import jax.numpy as jnp
from jax.experimental import pallas as pl
from jax.experimental.pallas import tpu as pltpu


def _mlp_kernel(x_ref, p_ref, o_ref):
    # x_ref : (F, TB)            feature-major, batch on lanes (TB = lane tile)
    # p_ref : (H, F + 1 + O + 1) packed param slab: [w1 | b1 | w2^T | b2(pad)]
    # o_ref : (O, TB)
    n_feature = x_ref.shape[0]
    n_output = o_ref.shape[0]

    x = x_ref[...]                                   # (F, TB)
    p = p_ref[...]                                   # (H, C) tiny, one load

    w1 = p[:, 0:n_feature]                           # (H, F)
    b1 = p[:, n_feature:n_feature + 1]               # (H, 1)
    w2t = p[:, n_feature + 1:n_feature + 1 + n_output]       # (H, O)
    b2 = p[0:n_output, n_feature + 1 + n_output:               # (O, 1)
             n_feature + 2 + n_output]

    # ---- Layer 1: K = F (tiny) -> VPU outer-product MAC, not an MXU K=1 matmul.
    h = w1[:, 0:1] * x[0:1, :]                       # (H, 1) * (1, TB) -> (H, TB)
    for f in range(1, n_feature):
        h = h + w1[:, f:f + 1] * x[f:f + 1, :]
    h = jnp.maximum(h + b1, 0.0)                     # fused bias + ReLU on VPU

    # ---- Layer 2: N = O (tiny) -> VPU multiply + XLU sublane reduce per row,
    #      accumulated locally and written with a single full-tile store.
    rows = [jnp.sum(w2t[:, o:o + 1] * h, axis=0, keepdims=True)
            for o in range(n_output)]                # each (1, TB)
    y = rows[0] if n_output == 1 else jnp.concatenate(rows, axis=0)   # (O, TB)
    o_ref[...] = (y + b2).astype(o_ref.dtype)


def prepare_params(w1, b1, w2, b2):
    """One-time packing of PyTorch-layout params into a single VMEM slab.

    w1: (H, F), b1: (H,), w2: (O, H), b2: (O,)  ->  (H, F + 1 + O + 1) f32.
    Hoisted out of the per-call forward path; cuts 5 input DMAs to 2.
    """
    H, _ = w1.shape
    O = w2.shape[0]
    b2_col = jnp.zeros((H, 1), w1.dtype).at[:O, 0].set(b2)
    return jnp.concatenate(
        [w1, b1.reshape(H, 1), jnp.transpose(w2), b2_col], axis=1)


@jax.jit
def net_forward(x, params):
    """x: (B, n_feature) f32 (PyTorch convention); params from prepare_params.
    Returns (B, n_output), matching nn.Linear -> ReLU -> nn.Linear."""
    B, n_feature = x.shape
    H, C = params.shape
    n_output = C - n_feature - 2

    # Feature-major view (F, B).  For F == 1 this reshape is copy-free; no
    # explicit batch padding — Pallas handles the partial lane block.
    if n_feature == 1:
        x_fm = x.reshape(1, B)
    else:
        x_fm = jnp.transpose(x)          # general path (one copy)

    # Lane tile: as wide as is useful, rounded to 128; single block at B=100.
    tile_b = min(2048, pl.cdiv(B, 128) * 128)
    grid = (pl.cdiv(B, tile_b),)

    y_fm = pl.pallas_call(
        _mlp_kernel,
        out_shape=jax.ShapeDtypeStruct((n_output, B), x.dtype),
        grid=grid,
        in_specs=[
            pl.BlockSpec((n_feature, tile_b), lambda i: (0, i)),   # x tiles
            pl.BlockSpec((H, C), lambda i: (0, 0)),                # params resident
        ],
        out_specs=pl.BlockSpec((n_output, tile_b), lambda i: (0, i)),
        compiler_params=pltpu.CompilerParams(
            dimension_semantics=("parallel",)),       # v7x: 2 TCs share batch
    )(x_fm, params)                                    # (O, B)

    # Back to batch-major; copy-free reshape for O == 1.
    if n_output == 1:
        return y_fm.reshape(B, 1)
    return jnp.transpose(y_fm)


def init_params(key, n_feature, n_hidden, n_output):
    """Deterministic init mirroring torch.nn.Linear's default:
    U(-1/sqrt(fan_in), 1/sqrt(fan_in)) for both weight and bias."""
    k1, k2, k3, k4 = jax.random.split(key, 4)
    bound1 = 1.0 / jnp.sqrt(jnp.float32(n_feature))
    bound2 = 1.0 / jnp.sqrt(jnp.float32(n_hidden))
    w1 = jax.random.uniform(k1, (n_hidden, n_feature), jnp.float32, -bound1, bound1)
    b1 = jax.random.uniform(k2, (n_hidden,), jnp.float32, -bound1, bound1)
    w2 = jax.random.uniform(k3, (n_output, n_hidden), jnp.float32, -bound2, bound2)
    b2 = jax.random.uniform(k4, (n_output,), jnp.float32, -bound2, bound2)
    return w1, b1, w2, b2


if __name__ == "__main__":
    # Shapes implied by the reference script: x = linspace(-1,1,100)[:,None]
    # -> batch=100, n_feature=1; choose n_hidden=32, n_output=1.
    n_feature, n_hidden, n_output = 1, 32, 1
    batch = 100

    key = jax.random.PRNGKey(0)
    w1, b1, w2, b2 = init_params(key, n_feature, n_hidden, n_output)
    params = prepare_params(w1, b1, w2, b2)   # done once, not per call

    x = jnp.expand_dims(jnp.linspace(-1.0, 1.0, batch, dtype=jnp.float32), axis=1)

    y = net_forward(x, params)
    y = jax.block_until_ready(y)

    # Pure-JAX reference of the same forward pass (PyTorch layout math).
    h_ref = jnp.maximum(x @ w1.T + b1, 0.0)
    y_ref = h_ref @ w2.T + b2
    assert y.shape == (batch, n_output)
    assert jnp.allclose(y, y_ref, atol=1e-5, rtol=1e-5)

    print("KERNEL_OK")
</pallas_src>

<mosaic_0001>
module attributes {stable_mosaic.version = 11 : i64} {
  func.func @_mlp_kernel(%arg0: i32, %arg1: memref<1x128xf32, #tpu.memory_space<vmem>>, %arg2: memref<32x4xf32, #tpu.memory_space<vmem>>, %arg3: memref<1x128xf32, #tpu.memory_space<vmem>>) attributes {dimension_semantics = [#tpu.dimension_semantics<parallel>], iteration_bounds = array<i64: 1>, scalar_prefetch = 0 : i64, scratch_operands = 0 : i64, tpu.core_type = #tpu.core_type<tc>, window_params = [{transform_indices = @transform_0, window_bounds = array<i64: 1, 128>}, {pipeline_mode = #tpu.pipeline_mode<synchronous>, transform_indices = @transform_1, window_bounds = array<i64: 32, 4>}, {transform_indices = @transform_2, window_bounds = array<i64: 1, 128>}]} {
    %c0 = arith.constant 0 : index
    %c0_0 = arith.constant 0 : index
    %0 = vector.load %arg1[%c0, %c0_0] : memref<1x128xf32, #tpu.memory_space<vmem>>, vector<1x128xf32>
    %c0_1 = arith.constant 0 : index
    %c0_2 = arith.constant 0 : index
    %1 = vector.load %arg2[%c0_1, %c0_2] : memref<32x4xf32, #tpu.memory_space<vmem>>, vector<32x4xf32>
    %2 = vector.extract_strided_slice %1 {offsets = [0, 0], sizes = [32, 1], strides = [1, 1]} : vector<32x4xf32> to vector<32x1xf32>
    %3 = vector.extract_strided_slice %1 {offsets = [0, 1], sizes = [32, 1], strides = [1, 1]} : vector<32x4xf32> to vector<32x1xf32>
    %4 = vector.extract_strided_slice %1 {offsets = [0, 2], sizes = [32, 1], strides = [1, 1]} : vector<32x4xf32> to vector<32x1xf32>
    %5 = vector.extract_strided_slice %1 {offsets = [0, 3], sizes = [1, 1], strides = [1, 1]} : vector<32x4xf32> to vector<1x1xf32>
    %6 = vector.broadcast %2 : vector<32x1xf32> to vector<32x128xf32>
    %7 = vector.broadcast %0 : vector<1x128xf32> to vector<32x128xf32>
    %8 = arith.mulf %6, %7 : vector<32x128xf32>
    %9 = vector.broadcast %3 : vector<32x1xf32> to vector<32x128xf32>
    %10 = arith.addf %8, %9 : vector<32x128xf32>
    %cst = arith.constant 0.000000e+00 : f32
    %11 = vector.broadcast %cst : f32 to vector<32x128xf32>
    %12 = arith.maximumf %10, %11 : vector<32x128xf32>
    %13 = vector.broadcast %4 : vector<32x1xf32> to vector<32x128xf32>
    %14 = arith.mulf %13, %12 : vector<32x128xf32>
    %cst_3 = arith.constant dense<0.000000e+00> : vector<128xf32>
    %15 = vector.multi_reduction <add>, %14, %cst_3 [0] : vector<32x128xf32> to vector<128xf32>
    %16 = vector.shape_cast %15 : vector<128xf32> to vector<1x128xf32>
    %17 = vector.broadcast %5 : vector<1x1xf32> to vector<1x128xf32>
    %18 = arith.addf %16, %17 : vector<1x128xf32>
    %c0_4 = arith.constant 0 : index
    %c0_5 = arith.constant 0 : index
    %19 = vector.load %arg3[%c0_4, %c0_5] : memref<1x128xf32, #tpu.memory_space<vmem>>, vector<1x128xf32>
    tpu.vector_store %arg3[%c0_4, %c0_5], %18 {strides = array<i32>} : memref<1x128xf32, #tpu.memory_space<vmem>>, vector<1x128xf32>,
    return
  }
  func.func @transform_0(%arg0: i32) -> (i32, i32) {
    %c0_i32 = arith.constant 0 : i32
    %c0_i32_0 = arith.constant 0 : i32
    return %c0_i32, %arg0 : i32, i32
  }
  func.func @transform_1(%arg0: i32) -> (i32, i32) {
    %c0_i32 = arith.constant 0 : i32
    %c0_i32_0 = arith.constant 0 : i32
    %c0_i32_1 = arith.constant 0 : i32
    return %c0_i32, %c0_i32_0 : i32, i32
  }
  func.func @transform_2(%arg0: i32) -> (i32, i32) {
    %c0_i32 = arith.constant 0 : i32
    %c0_i32_0 = arith.constant 0 : i32
    return %c0_i32, %arg0 : i32, i32
  }
}

</mosaic_0001>

<llo_original>
// kernel: net_forward.1
$region0: #{net_forward.1}
  #allocation0 [shape = 'u32[]', space=smem, size = 0x4, offset = 0x4, fixed_abs, tag = 'smem constant byte address 0x4 - core index']
  #allocation1 [shape = 'u32[144,128]{1,0:T(1,128)}', space=vmem, size = 0x12000, scoped, tag = 'internal scratch']
  %s0 = inlined_call_operand.vmem [shape: f32[1,100], index: 0, kind: input, shape index: {}]
  %s1 = inlined_call_operand.vmem [shape: f32[32,4], index: 1, kind: input, shape index: {}]
  %s2 = inlined_call_operand.hbm [shape: f32[1,100], index: 2, kind: output, shape index: {}]
  %s3 = sld [smem:[#allocation0]]
  $region18: #{net_forward.1} parent=0
    _
  %s5 = ssub.s32 1, %s3
  %s6 = scalar_select 0, %s5, %s3
  $region1: #{net_forward.1} parent=0
    #allocation2 [shape = 'u8[512]{0}', space=vmem, size = 0x400, scoped, tag = 'output window, operand 0, single buffered']
    #allocation3 [shape = 's32[1]{0}', space=sflag, size = 0x4, scoped, tag = 'scoped memory for net_forward.1']
    %7 = vsyncpa [#allocation3], 0
    // Predicated region
    $region2: #{net_forward.1} parent=1 // pred_check
      _
    $region3: #{net_forward.1} parent=1 // pred_check_branch
      %9 = sbr.rel (0) target = $region5
    $region4: #{net_forward.1} parent=1 // pred_region
      _
    $region5: #{net_forward.1} parent=1 // pred_fallthru
      _
    // Predicated region
    $region6: #{net_forward.1} parent=1 // pred_check
      _
    $region7: #{net_forward.1} parent=1 // pred_check_branch
      %11 = sbr.rel (0) target = $region9
    $region8: #{net_forward.1} parent=1 // pred_region
      _
    $region9: #{net_forward.1} parent=1 // pred_fallthru
      _
    %v12 = vld [vmem:[%s0] sm:$0x1]
    %v13 = vld [vmem:[%s1] sm:$0xff]
    %v14 = vld [vmem:[%s1 + $0x8] sm:$0xff]
    %v15 = vld [vmem:[%s1 + $0x10] sm:$0xff]
    %v16 = vld [vmem:[%s1 + $0x18] sm:$0xff]
    %18 = vset.pattern.permute.xlu0 0
    %19 = vperm.xlu0 %18, %v13
    %v20 = vpop.permute.xlu0 %19
    %23 = vset.pattern.permute.xlu0 0
    %24 = vperm.xlu0 %23, %v14
    %v25 = vpop.permute.xlu0 %24
    %28 = vset.pattern.permute.xlu0 0
    %29 = vperm.xlu0 %28, %v15
    %v30 = vpop.permute.xlu0 %29
    %33 = vset.pattern.permute.xlu0 0
    %34 = vperm.xlu0 %33, %v16
    %v35 = vpop.permute.xlu0 %34
    %v38 = vlaneseq
    %v39 = vshrl.u32 %v38, 7
    %v40 = vsub.s32 0, %v39
    %v41 = vrot.slane %v12, %v40
    %v43 = vmul.f32 %v20, %v41
    %v44 = vmul.f32 %v25, %v41
    %v45 = vmul.f32 %v30, %v41
    %v46 = vmul.f32 %v35, %v41
    %47 = vset.pattern.permute.xlu0 1
    %48 = vperm.xlu0 %47, %v13
    %v49 = vpop.permute.xlu0 %48
    %51 = vset.pattern.permute.xlu0 1
    %52 = vperm.xlu0 %51, %v14
    %v53 = vpop.permute.xlu0 %52
    %55 = vset.pattern.permute.xlu0 1
    %56 = vperm.xlu0 %55, %v15
    %v57 = vpop.permute.xlu0 %56
    %59 = vset.pattern.permute.xlu0 1
    %60 = vperm.xlu0 %59, %v16
    %v61 = vpop.permute.xlu0 %60
    %v63 = vadd.f32 %v43, %v49
    %v64 = vadd.f32 %v44, %v53
    %v65 = vadd.f32 %v45, %v57
    %v66 = vadd.f32 %v46, %v61
    %v67 = vmax.f32 %v63, 0.0
    %v68 = vmax.f32 %v64, 0.0
    %v69 = vmax.f32 %v65, 0.0
    %v70 = vmax.f32 %v66, 0.0
    %71 = vset.pattern.permute.xlu0 2
    %72 = vperm.xlu0 %71, %v13
    %v73 = vpop.permute.xlu0 %72
    %75 = vset.pattern.permute.xlu0 2
    %76 = vperm.xlu0 %75, %v14
    %v77 = vpop.permute.xlu0 %76
    %79 = vset.pattern.permute.xlu0 2
    %80 = vperm.xlu0 %79, %v15
    %v81 = vpop.permute.xlu0 %80
    %83 = vset.pattern.permute.xlu0 2
    %84 = vperm.xlu0 %83, %v16
    %v85 = vpop.permute.xlu0 %84
    %v87 = vmul.f32 %v73, %v67
    %v88 = vmul.f32 %v77, %v68
    %v89 = vmul.f32 %v81, %v69
    %v90 = vmul.f32 %v85, %v70
    %v91 = vadd.f32 %v87, %v88
    %v92 = vadd.f32 %v91, %v89
    %v93 = vadd.f32 %v92, %v90
    %v94 = vrot.slane %v93, 4
    %v95 = vadd.f32 %v93, %v94
    %v96 = vrot.slane %v95, 2
    %v97 = vadd.f32 %v95, %v96
    %v98 = vrot.slane %v97, 1
    %v99 = vadd.f32 %v97, %v98
    %100 = vset.pattern.permute.xlu0 3
    %101 = vperm.xlu0 %100, %v13
    %v102 = vpop.permute.xlu0 %101
    %v104 = vadd.f32 %v99, %v102
    %105 = vst [vmem:[#allocation2] sm:$0x1] %v104
    // Predicated region
    $region10: #{net_forward.1} parent=1 // pred_check
      _
    $region11: #{net_forward.1} parent=1 // pred_check_branch
      %107 = sbr.rel (0) target = $region13
    $region12: #{net_forward.1} parent=1 // pred_region
      %s109 = ssub.s32 16, 16
      %110 = vsyncadd [#allocation3], %s109
      %s112 = sshll.u32 [#allocation2], 4
      %s113 = int_to_ptr.vmem [resolvable:$true] %s112
      %115 = dma.vmem_to_hbm [thread:$0]  %s113, 16, %s2, [#allocation3]
    $region13: #{net_forward.1} parent=1 // pred_fallthru
      _
    // Predicated region
    $region14: #{net_forward.1} parent=1 // pred_check
      _
    $region15: #{net_forward.1} parent=1 // pred_check_branch
      %117 = sbr.rel (0) target = $region17
    $region16: #{net_forward.1} parent=1 // pred_region
      %118 = dma.done [#allocation3], 16
    $region17: #{net_forward.1} parent=1 // pred_fallthru
      _
    %119 = vsyncpa [#allocation3], 1

</llo_original>
